<compile_context>
chip_gen: v7x
topology: tpu7x:2x2x1
jax: 0.10.0
libtpu: 0.0.40
codegen_flags: <defaults>
</compile_context>

<pallas_src>
import jax
import jax.numpy as jnp
from jax.experimental import pallas as pl
from jax.experimental.pallas import tpu as pltpu


def _gaussian_mf_kernel(mean_ref, coef_ref, x_ref, o_ref):
    # mean_ref / coef_ref: (1, F*3) rows, broadcast along the batch (sublane) axis.
    # x_ref / o_ref:       (TB, F*3) tiles.
    d = x_ref[...] - mean_ref[...]
    o_ref[...] = jnp.exp(d * d * coef_ref[...])


def memfuncs_init(X):
    """Replicates MemFuncs.create_mem_funcs: means (mu-sd, mu, mu+sd), sigma = sd."""
    mu = jnp.mean(X, axis=0)
    sd = jnp.std(X, axis=0, ddof=1)                                     # torch.std: unbiased
    means = jnp.stack([mu - sd, mu, mu + sd], axis=1)                   # (F, 3)
    coefs = jnp.broadcast_to((-0.5 / (sd * sd))[:, None], means.shape)  # (F, 3)
    return means, coefs


def _pick_row_tile(B, L, itemsize):
    # Per grid step we hold ~ (x tile + out tile) x 2 (double buffering)
    # = 4 * TB * L * itemsize bytes of VMEM.  Keep that under an 8 MiB budget,
    # comfortably inside the scoped VMEM limit on v5e (16 MiB) / v6e / v7x (32 MiB).
    budget = 8 * 1024 * 1024
    max_tb = max(8, budget // (4 * max(L, 1) * itemsize))
    if B <= max_tb:
        return B                       # single full-array block, grid of 1
    tb = min(max_tb, 2048)             # cap per-step size; keeps the pipeline balanced
    return max(8, (tb // 8) * 8)       # sublane granularity


@jax.jit
def memfuncs_forward(X, means, coefs):
    B, F = X.shape
    n_mf = means.shape[1]
    L = F * n_mf

    # Interleave features x MFs on the lane axis: x_rep[b, f*n_mf + m] = X[b, f].
    # Single fused XLA op inside the jit; keeps the final reshape metadata-only.
    x_rep = jnp.repeat(X, n_mf, axis=1)                # (B, L)
    mean_row = means.reshape(1, L).astype(X.dtype)
    coef_row = coefs.reshape(1, L).astype(X.dtype)

    TB = _pick_row_tile(B, L, X.dtype.itemsize)
    grid = (pl.cdiv(B, TB),)                           # ragged B -> masked edge block

    out = pl.pallas_call(
        _gaussian_mf_kernel,
        out_shape=jax.ShapeDtypeStruct((B, L), X.dtype),
        grid=grid,
        in_specs=[
            pl.BlockSpec((1, L), lambda i: (0, 0)),    # mean row, resident across grid
            pl.BlockSpec((1, L), lambda i: (0, 0)),    # coef row, resident across grid
            pl.BlockSpec((TB, L), lambda i: (i, 0)),   # batch tile of inputs
        ],
        out_specs=pl.BlockSpec((TB, L), lambda i: (i, 0)),
        compiler_params=pltpu.CompilerParams(
            dimension_semantics=("parallel",),         # batch tiles are independent
        ),
    )(mean_row, coef_row, x_rep)

    # Contiguous split of the last axis -> metadata-only reshape, stays lane-dense.
    return out.reshape(B, F, n_mf)


if __name__ == "__main__":
    key = jax.random.PRNGKey(0)
    B, F = 8, 4                                        # (batch_size, num_features)
    X = jax.random.normal(key, (B, F), dtype=jnp.float32)

    means, coefs = memfuncs_init(X)                    # construction-time stats, as in MemFuncs(X)
    y = memfuncs_forward(X, means, coefs)
    y = jax.block_until_ready(y)

    # Pure-JAX reference of MemFuncs.forward.
    mu = jnp.mean(X, axis=0)
    sd = jnp.std(X, axis=0, ddof=1)
    means_ref = jnp.stack([mu - sd, mu, mu + sd], axis=1)          # (F, 3)
    y_ref = jnp.exp(-((X[:, :, None] - means_ref[None, :, :]) ** 2)
                    / (2.0 * (sd[None, :, None] ** 2)))

    assert y.shape == (B, F, 3) and y.dtype == X.dtype
    assert jnp.allclose(y, y_ref, atol=1e-5, rtol=1e-5)
    print("KERNEL_OK")
</pallas_src>

<mosaic_0001>
module attributes {stable_mosaic.version = 11 : i64} {
  func.func @_gaussian_mf_kernel(%arg0: i32, %arg1: memref<1x12xf32, #tpu.memory_space<vmem>>, %arg2: memref<1x12xf32, #tpu.memory_space<vmem>>, %arg3: memref<8x12xf32, #tpu.memory_space<vmem>>, %arg4: memref<8x12xf32, #tpu.memory_space<vmem>>) attributes {dimension_semantics = [#tpu.dimension_semantics<parallel>], iteration_bounds = array<i64: 1>, scalar_prefetch = 0 : i64, scratch_operands = 0 : i64, tpu.core_type = #tpu.core_type<tc>, window_params = [{pipeline_mode = #tpu.pipeline_mode<synchronous>, transform_indices = @transform_0, window_bounds = array<i64: 1, 12>}, {pipeline_mode = #tpu.pipeline_mode<synchronous>, transform_indices = @transform_1, window_bounds = array<i64: 1, 12>}, {transform_indices = @transform_2, window_bounds = array<i64: 8, 12>}, {transform_indices = @transform_3, window_bounds = array<i64: 8, 12>}]} {
    %c0 = arith.constant 0 : index
    %c0_0 = arith.constant 0 : index
    %0 = vector.load %arg3[%c0, %c0_0] : memref<8x12xf32, #tpu.memory_space<vmem>>, vector<8x12xf32>
    %c0_1 = arith.constant 0 : index
    %c0_2 = arith.constant 0 : index
    %1 = vector.load %arg1[%c0_1, %c0_2] : memref<1x12xf32, #tpu.memory_space<vmem>>, vector<1x12xf32>
    %2 = vector.broadcast %1 : vector<1x12xf32> to vector<8x12xf32>
    %3 = arith.subf %0, %2 : vector<8x12xf32>
    %4 = arith.mulf %3, %3 : vector<8x12xf32>
    %c0_3 = arith.constant 0 : index
    %c0_4 = arith.constant 0 : index
    %5 = vector.load %arg2[%c0_3, %c0_4] : memref<1x12xf32, #tpu.memory_space<vmem>>, vector<1x12xf32>
    %6 = vector.broadcast %5 : vector<1x12xf32> to vector<8x12xf32>
    %7 = arith.mulf %4, %6 : vector<8x12xf32>
    %8 = math.exp %7 : vector<8x12xf32>
    %c0_5 = arith.constant 0 : index
    %c0_6 = arith.constant 0 : index
    %9 = vector.load %arg4[%c0_5, %c0_6] : memref<8x12xf32, #tpu.memory_space<vmem>>, vector<8x12xf32>
    tpu.vector_store %arg4[%c0_5, %c0_6], %8 {strides = array<i32>} : memref<8x12xf32, #tpu.memory_space<vmem>>, vector<8x12xf32>,
    return
  }
  func.func @transform_0(%arg0: i32) -> (i32, i32) {
    %c0_i32 = arith.constant 0 : i32
    %c0_i32_0 = arith.constant 0 : i32
    %c0_i32_1 = arith.constant 0 : i32
    return %c0_i32, %c0_i32_0 : i32, i32
  }
  func.func @transform_1(%arg0: i32) -> (i32, i32) {
    %c0_i32 = arith.constant 0 : i32
    %c0_i32_0 = arith.constant 0 : i32
    %c0_i32_1 = arith.constant 0 : i32
    return %c0_i32, %c0_i32_0 : i32, i32
  }
  func.func @transform_2(%arg0: i32) -> (i32, i32) {
    %c0_i32 = arith.constant 0 : i32
    %c0_i32_0 = arith.constant 0 : i32
    return %arg0, %c0_i32 : i32, i32
  }
  func.func @transform_3(%arg0: i32) -> (i32, i32) {
    %c0_i32 = arith.constant 0 : i32
    %c0_i32_0 = arith.constant 0 : i32
    return %arg0, %c0_i32 : i32, i32
  }
}

</mosaic_0001>

<llo_original>
// kernel: memfuncs_forward.1
$region0: #{memfuncs_forward.1}
  #allocation0 [shape = 'u32[]', space=smem, size = 0x4, offset = 0x4, fixed_abs, tag = 'smem constant byte address 0x4 - core index']
  #allocation1 [shape = 'u32[144,128]{1,0:T(1,128)}', space=vmem, size = 0x12000, scoped, tag = 'internal scratch']
  %s0 = inlined_call_operand.vmem [shape: f32[1,12], index: 0, kind: input, shape index: {}]
  %s1 = inlined_call_operand.vmem [shape: f32[1,12], index: 1, kind: input, shape index: {}]
  %s2 = inlined_call_operand.vmem [shape: f32[8,12], index: 2, kind: input, shape index: {}]
  %s3 = inlined_call_operand.vmem [shape: f32[8,12], index: 3, kind: output, shape index: {}]
  %s4 = sld [smem:[#allocation0]]
  $region22: #{memfuncs_forward.1} parent=0
    _
  %s6 = ssub.s32 1, %s4
  %s7 = scalar_select 0, %s6, %s4
  // Predicated region
  $region2: #{memfuncs_forward.1} parent=0 // pred_check
    _
  $region3: #{memfuncs_forward.1} parent=0 // pred_check_branch
    %9 = sbr.rel (0) target = $region5
  $region4: #{memfuncs_forward.1} parent=0 // pred_region
    _
  $region5: #{memfuncs_forward.1} parent=0 // pred_fallthru
    _
  // Predicated region
  $region6: #{memfuncs_forward.1} parent=0 // pred_check
    _
  $region7: #{memfuncs_forward.1} parent=0 // pred_check_branch
    %11 = sbr.rel (0) target = $region9
  $region8: #{memfuncs_forward.1} parent=0 // pred_region
    _
  $region9: #{memfuncs_forward.1} parent=0 // pred_fallthru
    _
  // Predicated region
  $region10: #{memfuncs_forward.1} parent=0 // pred_check
    _
  $region11: #{memfuncs_forward.1} parent=0 // pred_check_branch
    %13 = sbr.rel (0) target = $region13
  $region12: #{memfuncs_forward.1} parent=0 // pred_region
    _
  $region13: #{memfuncs_forward.1} parent=0 // pred_fallthru
    _
  %v14 = vld [vmem:[%s2] sm:$0xff]
  %v15 = vld [vmem:[%s0] sm:$0x1]
  %v17 = vlaneseq
  %v18 = vshrl.u32 %v17, 7
  %v19 = vsub.s32 0, %v18
  %v20 = vrot.slane %v15, %v19
  %v22 = vsub.f32 %v14, %v20
  %v23 = vmul.f32 %v22, %v22
  %v24 = vld [vmem:[%s1] sm:$0x1]
  %v26 = vlaneseq
  %v27 = vshrl.u32 %v26, 7
  %v28 = vsub.s32 0, %v27
  %v29 = vrot.slane %v24, %v28
  %v31 = vmul.f32 %v23, %v29
  %v32 = vmul.f32 %v31, 1.442695
  %v33 = vpow.pop %v32
  %vm34 = vcmask 97280
  %35 = vst.msk [vmem:[%s3] sm:$0xff] %vm34, %v33
  // Predicated region
  $region14: #{memfuncs_forward.1} parent=0 // pred_check
    _
  $region15: #{memfuncs_forward.1} parent=0 // pred_check_branch
    %37 = sbr.rel (0) target = $region17
  $region16: #{memfuncs_forward.1} parent=0 // pred_region
    _
  $region17: #{memfuncs_forward.1} parent=0 // pred_fallthru
    _
  // Predicated region
  $region18: #{memfuncs_forward.1} parent=0 // pred_check
    _
  $region19: #{memfuncs_forward.1} parent=0 // pred_check_branch
    %39 = sbr.rel (0) target = $region21
  $region20: #{memfuncs_forward.1} parent=0 // pred_region
    _
  $region21: #{memfuncs_forward.1} parent=0 // pred_fallthru
    _

</llo_original>
